<compile_context>
chip_gen: v6e
topology: v6e:2x2x1
jax: 0.10.0
libtpu: 0.0.40
codegen_flags: <defaults>
</compile_context>

<pallas_src>
import functools

import jax
import jax.numpy as jnp
from jax.experimental import pallas as pl
from jax.experimental.pallas import tpu as pltpu


# --------------------------------------------------------------------------- #
# Kernels
# --------------------------------------------------------------------------- #
def _sa_single_pass_kernel(x_ref, o_ref, *, n_real, need_mask):
    """Whole image resident in VMEM.

    x_ref: (1, 3, R, L) input block for batch element `bi`.
    o_ref: (1, 1, L) f32 per-lane partial sums of k (lane-dense store).
    """
    x = x_ref[0].astype(jnp.float32)                        # (3, R, L)

    # Per-channel spatial mean (zero padding does not perturb the sum).
    s = jnp.sum(x, axis=2, keepdims=True)                   # (3, R, 1)  lane reduce (XLU)
    s = jnp.sum(s, axis=1, keepdims=True)                   # (3, 1, 1)  sublane reduce
    m = s * jnp.float32(1.0 / n_real)

    d = x - m                                               # broadcast over (R, L)
    k = jnp.sqrt(d[0] * d[0] + d[1] * d[1] + d[2] * d[2])   # (R, L), sqrt on EUP

    if need_mask:
        rows, lanes = k.shape
        idx = (jax.lax.broadcasted_iota(jnp.int32, (rows, lanes), 0) * lanes
               + jax.lax.broadcasted_iota(jnp.int32, (rows, lanes), 1))
        k = jnp.where(idx < n_real, k, jnp.float32(0.0))

    o_ref[...] = jnp.sum(k, axis=0, keepdims=True)[None]    # (1, 1, L)


def _sa_tiled_kernel(x_ref, o_ref, mean_ref, *, n_real, tile_pixels, need_mask):
    """Two-phase tiled pass for images that do not fit VMEM.

    grid = (B, 2, n_tiles): axis 1 is the phase (0: channel sums, 1: k sums),
    axis 2 walks row tiles of the lane-dense flattened image.

    x_ref:    (1, 3, TR, L) input tile.
    o_ref:    (1, 1, L) f32 per-batch per-lane partial sums; block index only
              depends on the batch, so it stays resident across phase/tile axes.
    mean_ref: (3, 1, 1) f32 scratch: channel sums, then channel means.
    """
    p = pl.program_id(1)
    t = pl.program_id(2)
    t_last = pl.num_programs(2) - 1

    x = x_ref[0].astype(jnp.float32)                        # (3, TR, L)

    @pl.when((p == 0) & (t == 0))
    def _():
        mean_ref[...] = jnp.zeros_like(mean_ref)
        o_ref[...] = jnp.zeros_like(o_ref)

    @pl.when(p == 0)
    def _():
        s = jnp.sum(x, axis=2, keepdims=True)               # (3, TR, 1)
        mean_ref[...] += jnp.sum(s, axis=1, keepdims=True)  # (3, 1, 1)

    @pl.when((p == 0) & (t == t_last))
    def _():
        mean_ref[...] *= jnp.float32(1.0 / n_real)

    @pl.when(p == 1)
    def _():
        m = mean_ref[...]                                   # (3, 1, 1)
        d0 = x[0] - m[0]
        d1 = x[1] - m[1]
        d2 = x[2] - m[2]
        k = jnp.sqrt(d0 * d0 + d1 * d1 + d2 * d2)           # (TR, L)
        if need_mask:
            rows, lanes = k.shape
            local = (jax.lax.broadcasted_iota(jnp.int32, (rows, lanes), 0) * lanes
                     + jax.lax.broadcasted_iota(jnp.int32, (rows, lanes), 1))
            gidx = t * tile_pixels + local
            k = jnp.where(gidx < n_real, k, jnp.float32(0.0))
        o_ref[...] += jnp.sum(k, axis=0, keepdims=True)[None]


# --------------------------------------------------------------------------- #
# Wrapper
# --------------------------------------------------------------------------- #
def _round_up(v, m):
    return ((v + m - 1) // m) * m


def _default_vmem_limit_bytes():
    """Generation-aware scoped-VMEM limit (~96 MiB on v5e/v6e, ~48 MiB on v7x)."""
    try:
        cap = int(pltpu.get_tpu_info().vmem_capacity_bytes)
    except Exception:
        cap = 64 << 20              # v7x per-TensorCore capacity (smallest of the family)
    return int(min((cap * 3) // 4, 100 << 20))


def sa_loss(x, *, lane_width=512, force_tiled=False, tile_rows=None,
            vmem_limit_bytes=None):
    """Pallas forward of Sa_Loss.  x: (B, 3, H, W) float array (NCHW). Returns scalar."""
    b, c, h, w = x.shape
    assert c == 3, "Sa_Loss splits the channel dim into exactly r, g, b"
    n_real = h * w
    itemsize = jnp.dtype(x.dtype).itemsize
    sub_align = {4: 8, 2: 16, 1: 32}.get(itemsize, 8)       # dtype-aware sublane packing

    if vmem_limit_bytes is None:
        vmem_limit_bytes = _default_vmem_limit_bytes()

    # Lane-dense flatten: widest L (multiple of 128) that divides the pixel count
    # (no pad copy needed); otherwise L = 128 with a zero pad + in-kernel mask.
    lane = None
    for cand in (lane_width, 512, 256, 128):
        if cand and cand % 128 == 0 and n_real % cand == 0:
            lane = cand
            break
    if lane is None:
        lane = 128
    r = -(-n_real // lane)                                   # rows of flattened image

    # Single pass (one HBM read of x) whenever the double-buffered per-image
    # block plus its f32 working set fits comfortably in the VMEM budget.
    img_in_bytes = 3 * r * lane * itemsize
    plane_f32 = r * lane * 4
    single_cost = 2 * img_in_bytes + 3 * plane_f32 + 2 * plane_f32
    use_single = (not force_tiled) and single_cost <= int(0.7 * vmem_limit_bytes)

    if use_single:
        tr = r
        n_tiles = 1
        r_pad = r
    else:
        if tile_rows is None:
            per_row = 2 * 3 * lane * itemsize + 5 * lane * 4
            tr = int(0.5 * vmem_limit_bytes) // per_row
        else:
            tr = int(tile_rows)
        tr = max(sub_align, (tr // sub_align) * sub_align)
        tr = min(tr, _round_up(r, sub_align))
        n_tiles = -(-r // tr)
        r_pad = n_tiles * tr

    n_pad = r_pad * lane
    need_mask = n_pad != n_real

    x_flat = x.reshape(b, 3, n_real)                         # free row-major reshape
    if n_pad != n_real:
        x_flat = jnp.pad(x_flat, ((0, 0), (0, 0), (0, n_pad - n_real)))
    xr = x_flat.reshape(b, 3, r_pad, lane)

    if use_single:
        kernel = functools.partial(_sa_single_pass_kernel,
                                   n_real=n_real, need_mask=need_mask)
        partials = pl.pallas_call(
            kernel,
            out_shape=jax.ShapeDtypeStruct((b, 1, lane), jnp.float32),
            grid_spec=pltpu.PrefetchScalarGridSpec(
                num_scalar_prefetch=0,
                grid=(b,),
                in_specs=[pl.BlockSpec((1, 3, r_pad, lane),
                                       lambda bi: (bi, 0, 0, 0))],
                out_specs=pl.BlockSpec((1, 1, lane), lambda bi: (bi, 0, 0)),
            ),
            compiler_params=pltpu.CompilerParams(
                dimension_semantics=("parallel",),
                vmem_limit_bytes=int(vmem_limit_bytes),
            ),
        )(xr)
    else:
        # TODO(synk): on v7x with B == 1, split the row-tile axis across the two
        # TensorCores (two pallas_calls) instead of relying on batch parallelism.
        kernel = functools.partial(_sa_tiled_kernel, n_real=n_real,
                                   tile_pixels=tr * lane, need_mask=need_mask)
        partials = pl.pallas_call(
            kernel,
            out_shape=jax.ShapeDtypeStruct((b, 1, lane), jnp.float32),
            grid_spec=pltpu.PrefetchScalarGridSpec(
                num_scalar_prefetch=0,
                grid=(b, 2, n_tiles),
                in_specs=[pl.BlockSpec((1, 3, tr, lane),
                                       lambda bi, p, t: (bi, 0, t, 0))],
                out_specs=pl.BlockSpec((1, 1, lane),
                                       lambda bi, p, t: (bi, 0, 0)),
                scratch_shapes=[pltpu.VMEM((3, 1, 1), jnp.float32)],
            ),
            compiler_params=pltpu.CompilerParams(
                dimension_semantics=("parallel", "arbitrary", "arbitrary"),
                vmem_limit_bytes=int(vmem_limit_bytes),
            ),
        )(xr)

    # Tiny final reduction over the (B, 1, L) lane-dense partial sums.
    return jnp.sum(partials) / jnp.float32(b * n_real)


# --------------------------------------------------------------------------- #
# Reference + self-test
# --------------------------------------------------------------------------- #
def _sa_loss_ref(x):
    xf = x.astype(jnp.float32)
    mean_rgb = jnp.mean(xf, axis=(2, 3), keepdims=True)
    d = xf - mean_rgb
    k = jnp.sqrt(jnp.sum(d * d, axis=1))
    return jnp.mean(k)


if __name__ == "__main__":
    key = jax.random.PRNGKey(0)
    k1, k2, k3, k4 = jax.random.split(key, 4)

    # 1) Small NCHW input (single-pass path; W=16 flattened to lane-dense L=256).
    x1 = jax.random.uniform(k1, (2, 3, 16, 16), dtype=jnp.float32)
    out1 = jax.block_until_ready(sa_loss(x1))
    ref1 = _sa_loss_ref(x1)
    assert jnp.allclose(out1, ref1, rtol=1e-4, atol=1e-5), (out1, ref1)

    # 2) Forced two-phase tiled path with multiple row tiles per image.
    x2 = jax.random.uniform(k2, (2, 3, 64, 128), dtype=jnp.float32)
    out2 = jax.block_until_ready(sa_loss(x2, force_tiled=True, tile_rows=8))
    ref2 = _sa_loss_ref(x2)
    assert jnp.allclose(out2, ref2, rtol=1e-4, atol=1e-5), (out2, ref2)

    # 3) Ragged pixel count (H*W not a multiple of 128) -> pad + in-kernel mask.
    x3 = jax.random.uniform(k3, (1, 3, 15, 15), dtype=jnp.float32)
    out3 = jax.block_until_ready(sa_loss(x3))
    ref3 = _sa_loss_ref(x3)
    assert jnp.allclose(out3, ref3, rtol=1e-4, atol=1e-5), (out3, ref3)

    # 4) Ragged + forced tiled path (mask exercised across multiple tiles).
    x4 = jax.random.uniform(k4, (1, 3, 100, 100), dtype=jnp.float32)
    out4 = jax.block_until_ready(sa_loss(x4, force_tiled=True, tile_rows=16))
    ref4 = _sa_loss_ref(x4)
    assert jnp.allclose(out4, ref4, rtol=1e-4, atol=1e-5), (out4, ref4)

    # 5) bf16 ingest (preferred memory-bound dtype); f32 accumulation in-kernel.
    x5 = x1.astype(jnp.bfloat16)
    out5 = jax.block_until_ready(sa_loss(x5))
    ref5 = _sa_loss_ref(x5)
    assert jnp.allclose(out5, ref5, rtol=1e-4, atol=1e-5), (out5, ref5)

    print("KERNEL_OK")
</pallas_src>

<mosaic_0001>
module attributes {stable_mosaic.version = 11 : i64} {
  func.func @_sa_single_pass_kernel(%arg0: i32, %arg1: memref<1x3x1x256xf32, #tpu.memory_space<vmem>>, %arg2: memref<1x1x256xf32, #tpu.memory_space<vmem>>) attributes {dimension_semantics = [#tpu.dimension_semantics<parallel>], iteration_bounds = array<i64: 2>, scalar_prefetch = 0 : i64, scratch_operands = 0 : i64, tpu.core_type = #tpu.core_type<tc>, window_params = [{transform_indices = @transform_0, window_bounds = array<i64: 1, 3, 1, 256>}, {transform_indices = @transform_1, window_bounds = array<i64: 1, 1, 256>}]} {
    %c0 = arith.constant 0 : index
    %c0_0 = arith.constant 0 : index
    %c0_1 = arith.constant 0 : index
    %c0_2 = arith.constant 0 : index
    %0 = vector.load %arg1[%c0, %c0_0, %c0_1, %c0_2] : memref<1x3x1x256xf32, #tpu.memory_space<vmem>>, vector<1x3x1x256xf32>
    %1 = vector.shape_cast %0 : vector<1x3x1x256xf32> to vector<3x1x256xf32>
    %cst = arith.constant dense<0.000000e+00> : vector<3x1xf32>
    %2 = vector.multi_reduction <add>, %1, %cst [2] : vector<3x1x256xf32> to vector<3x1xf32>
    %3 = vector.shape_cast %2 : vector<3x1xf32> to vector<3x1x1xf32>
    %cst_3 = arith.constant dense<0.000000e+00> : vector<3x1xf32>
    %4 = vector.multi_reduction <add>, %3, %cst_3 [1] : vector<3x1x1xf32> to vector<3x1xf32>
    %5 = vector.shape_cast %4 : vector<3x1xf32> to vector<3x1x1xf32>
    %cst_4 = arith.constant 3.906250e-03 : f32
    %6 = vector.broadcast %cst_4 : f32 to vector<3x1x1xf32>
    %7 = arith.mulf %5, %6 : vector<3x1x1xf32>
    %8 = vector.broadcast %7 : vector<3x1x1xf32> to vector<3x1x256xf32>
    %9 = arith.subf %1, %8 : vector<3x1x256xf32>
    %10 = vector.extract_strided_slice %9 {offsets = [0, 0, 0], sizes = [1, 1, 256], strides = [1, 1, 1]} : vector<3x1x256xf32> to vector<1x1x256xf32>
    %11 = vector.shape_cast %10 : vector<1x1x256xf32> to vector<1x256xf32>
    %12 = vector.extract_strided_slice %9 {offsets = [0, 0, 0], sizes = [1, 1, 256], strides = [1, 1, 1]} : vector<3x1x256xf32> to vector<1x1x256xf32>
    %13 = vector.shape_cast %12 : vector<1x1x256xf32> to vector<1x256xf32>
    %14 = arith.mulf %11, %13 : vector<1x256xf32>
    %15 = vector.extract_strided_slice %9 {offsets = [1, 0, 0], sizes = [1, 1, 256], strides = [1, 1, 1]} : vector<3x1x256xf32> to vector<1x1x256xf32>
    %16 = vector.shape_cast %15 : vector<1x1x256xf32> to vector<1x256xf32>
    %17 = vector.extract_strided_slice %9 {offsets = [1, 0, 0], sizes = [1, 1, 256], strides = [1, 1, 1]} : vector<3x1x256xf32> to vector<1x1x256xf32>
    %18 = vector.shape_cast %17 : vector<1x1x256xf32> to vector<1x256xf32>
    %19 = arith.mulf %16, %18 : vector<1x256xf32>
    %20 = arith.addf %14, %19 : vector<1x256xf32>
    %21 = vector.extract_strided_slice %9 {offsets = [2, 0, 0], sizes = [1, 1, 256], strides = [1, 1, 1]} : vector<3x1x256xf32> to vector<1x1x256xf32>
    %22 = vector.shape_cast %21 : vector<1x1x256xf32> to vector<1x256xf32>
    %23 = vector.extract_strided_slice %9 {offsets = [2, 0, 0], sizes = [1, 1, 256], strides = [1, 1, 1]} : vector<3x1x256xf32> to vector<1x1x256xf32>
    %24 = vector.shape_cast %23 : vector<1x1x256xf32> to vector<1x256xf32>
    %25 = arith.mulf %22, %24 : vector<1x256xf32>
    %26 = arith.addf %20, %25 : vector<1x256xf32>
    %27 = math.sqrt %26 : vector<1x256xf32>
    %cst_5 = arith.constant dense<0.000000e+00> : vector<256xf32>
    %28 = vector.multi_reduction <add>, %27, %cst_5 [0] : vector<1x256xf32> to vector<256xf32>
    %29 = vector.shape_cast %28 : vector<256xf32> to vector<1x256xf32>
    %30 = vector.shape_cast %29 : vector<1x256xf32> to vector<1x1x256xf32>
    %c0_6 = arith.constant 0 : index
    %c0_7 = arith.constant 0 : index
    %c0_8 = arith.constant 0 : index
    %31 = vector.load %arg2[%c0_6, %c0_7, %c0_8] : memref<1x1x256xf32, #tpu.memory_space<vmem>>, vector<1x1x256xf32>
    tpu.vector_store %arg2[%c0_6, %c0_7, %c0_8], %30 {strides = array<i32>} : memref<1x1x256xf32, #tpu.memory_space<vmem>>, vector<1x1x256xf32>,
    return
  }
  func.func @transform_0(%arg0: i32) -> (i32, i32, i32, i32) {
    %c0_i32 = arith.constant 0 : i32
    %c0_i32_0 = arith.constant 0 : i32
    %c0_i32_1 = arith.constant 0 : i32
    %c0_i32_2 = arith.constant 0 : i32
    return %arg0, %c0_i32, %c0_i32_0, %c0_i32_1 : i32, i32, i32, i32
  }
  func.func @transform_1(%arg0: i32) -> (i32, i32, i32) {
    %c0_i32 = arith.constant 0 : i32
    %c0_i32_0 = arith.constant 0 : i32
    %c0_i32_1 = arith.constant 0 : i32
    return %arg0, %c0_i32, %c0_i32_0 : i32, i32, i32
  }
}

</mosaic_0001>

<llo_original>
// kernel: tpu_custom_call.1
$region0: #{tpu_custom_call.1}
  #allocation0 [shape = 'u32[]', space=smem, size = 0x4, offset = 0x4, fixed_abs, tag = 'smem constant byte address 0x4 - core index']
  #allocation1 [shape = 'u32[144,128]{1,0:T(1,128)}', space=vmem, size = 0x12000, scoped, tag = 'internal scratch']
  %s0 = inlined_call_operand.hbm [shape: f32[2,3,1,256], index: 0, kind: input, shape index: {}]
  %s1 = inlined_call_operand.hbm [shape: f32[2,1,256], index: 1, kind: output, shape index: {}]
  %s2 = sld [smem:[#allocation0]]
  $region41: #{tpu_custom_call.1} parent=0
    _
  %s4 = ssub.s32 1, %s2
  %s5 = scalar_select 0, %s4, %s2
  $region1: #{tpu_custom_call.1} parent=0
    #allocation2 [shape = 'u8[6144]{0}', space=vmem, size = 0x1800, scoped, tag = 'input window, operand 0']
    #allocation3 [shape = 's32[2]{0}', space=sflag, size = 0x8, scoped, tag = 'scoped memory for tpu_custom_call.1']
    #allocation4 [shape = 's32[2]{0}', space=sflag, size = 0x8, scoped, tag = 'scoped memory for tpu_custom_call.1']
    #allocation5 [shape = 'u8[2048]{0}', space=vmem, size = 0x800, scoped, tag = 'output window, operand 0']
    %6 = vsyncpa [#allocation3], 0
    %s7 = scalar_lea.sflag [#allocation3], 1
    %8 = vsyncpa %s7, 0
    %9 = vsyncpa [#allocation4], 0
    %s10 = scalar_lea.sflag [#allocation4], 1
    %11 = vsyncpa %s10, 0
    loop: start=0, step=1, limit=4
    $region2: #{tpu_custom_call.1} parent=1 // loop_pre_header
      _
    $region3: #{tpu_custom_call.1} parent=1 // loop_header
      %s13 = sphi 0, %s17
      %p14 = scmp.ge.s32.totalorder %s13, 4
      %s23 = sphi 0, %s25
      %s26 = sphi 0, %s23
      %s27 = sphi 0, %s26
      %s43 = sphi 0, %s27
      %s49 = sphi 0, %s51
      %s52 = sphi 0, %s49
      %s53 = sphi 0, %s52
      %s69 = sphi 0, %s53
    $region4: #{tpu_custom_call.1} parent=1 // loop_header_branch
      %16 = sbr.rel (%p14) target = $region8
    $region5: #{tpu_custom_call.1} parent=1 // loop_body
      %s18 = ssub.s32 %s13, 1
      %s19 = ssub.s32 %s13, 2
      %s20 = sadd.s32 %s13, 1
      %s21 = ssub.s32 %s13, %s20
      %p22 = scmp.eq.s32.totalorder %s21, 0
      %s24 = sadd.s32 %s23, 1
      %s25 = scalar_select %p22, %s23, %s24
      %p28 = pneg %p22
      %p29 = scmp.eq.s32.totalorder %s13, 1
      %p30 = por %p28, %p29
      %p31 = scmp.ne.s32.totalorder %s23, %s26
      %p32 = scmp.eq.s32.totalorder %s13, 0
      %p33 = por %p31, %p32
      %p34 = scmp.ne.s32.totalorder %s23, %s26
      %p35 = scmp.eq.s32.totalorder %s18, 1
      %p36 = por %p34, %p35
      %p37 = scmp.ne.s32.totalorder %s26, %s27
      %p38 = scmp.eq.s32.totalorder %s18, 0
      %p39 = por %p37, %p38
      %p40 = scmp.ne.s32.totalorder %s26, %s27
      %p41 = scmp.eq.s32.totalorder %s19, 1
      %p42 = por %p40, %p41
      %p44 = scmp.ne.s32.totalorder %s27, %s43
      %p45 = scmp.eq.s32.totalorder %s19, 0
      %p46 = por %p44, %p45
      %s47 = ssub.s32 %s13, %s20
      %p48 = scmp.eq.s32.totalorder %s47, 0
      %s50 = sadd.s32 %s49, 1
      %s51 = scalar_select %p48, %s49, %s50
      %p54 = pneg %p48
      %p55 = scmp.eq.s32.totalorder %s13, 1
      %p56 = por %p54, %p55
      %p57 = scmp.ne.s32.totalorder %s49, %s52
      %p58 = scmp.eq.s32.totalorder %s13, 0
      %p59 = por %p57, %p58
      %p60 = scmp.ne.s32.totalorder %s49, %s52
      %p61 = scmp.eq.s32.totalorder %s18, 1
      %p62 = por %p60, %p61
      %p63 = scmp.ne.s32.totalorder %s52, %s53
      %p64 = scmp.eq.s32.totalorder %s18, 0
      %p65 = por %p63, %p64
      %p66 = scmp.ne.s32.totalorder %s52, %s53
      %p67 = scmp.eq.s32.totalorder %s19, 1
      %p68 = por %p66, %p67
      %p70 = scmp.ne.s32.totalorder %s53, %s69
      %p71 = scmp.eq.s32.totalorder %s19, 0
      %p72 = por %p70, %p71
      %p73 = scmp.le.s32.totalorder 1, %s13
      %p74 = scmp.lt.s32.totalorder %s13, 3
      %p75 = pnand %p73, %p74
      %p76 = pneg %p75
      // Predicated region
      $region9: #{tpu_custom_call.1} parent=5 // pred_check
        _
      $region10: #{tpu_custom_call.1} parent=5 // pred_check_branch
        %78 = sbr.rel (%p75) target = $region12
      $region11: #{tpu_custom_call.1} parent=5 // pred_region
        %s79 = ssub.s32 %s13, 1
      $region12: #{tpu_custom_call.1} parent=5 // pred_fallthru
        _
      %p80 = scmp.lt.s32.totalorder %s13, 2
      // Predicated region
      $region13: #{tpu_custom_call.1} parent=5 // pred_check
        %p81 = pneg %p80
      $region14: #{tpu_custom_call.1} parent=5 // pred_check_branch
        %83 = sbr.rel (%p81) target = $region16
      $region15: #{tpu_custom_call.1} parent=5 // pred_region
        // Predicated region
        $region17: #{tpu_custom_call.1} parent=15 // pred_check
          %p84 = pneg %p33
        $region18: #{tpu_custom_call.1} parent=15 // pred_check_branch
          %86 = sbr.rel (%p84) target = $region20
        $region19: #{tpu_custom_call.1} parent=15 // pred_region
          %s87 = sand.u32 %s23, 1
          %s88 = scalar_lea.sflag [#allocation3], %s87
          %s89 = sand.u32 %s23, 1
          %s90 = smul.addr %s89, 6
          %s91 = scalar_lea.vmem [#allocation2], %s90
          %s93 = ssub.s32 96, 96
          %94 = vsyncadd %s88, %s93
          %s95 = smul.addr %s13, 6
          %s96 = smul.addr %s95, 16
          %s97 = scalar_lea.hbm %s0, %s96
          %s98 = sshll.u32 %s91, 4
          %s99 = int_to_ptr.vmem [resolvable:$true] %s98
          %104 = dma.hbm_to_vmem [thread:$0]  %s97, 96, %s99, %s88, 32, 32, 2
        $region20: #{tpu_custom_call.1} parent=15 // pred_fallthru
          _
      $region16: #{tpu_custom_call.1} parent=5 // pred_fallthru
        _
      %p105 = scmp.le.s32.totalorder 1, %s13
      %p106 = scmp.lt.s32.totalorder %s13, 3
      %p107 = pnand %p105, %p106
      %p108 = pneg %p107
      // Predicated region
      $region21: #{tpu_custom_call.1} parent=5 // pred_check
        _
      $region22: #{tpu_custom_call.1} parent=5 // pred_check_branch
        %110 = sbr.rel (%p107) target = $region24
      $region23: #{tpu_custom_call.1} parent=5 // pred_region
        %s111 = ssub.s32 %s13, 1
        %s112 = sand.u32 %s26, 1
        %s113 = scalar_lea.sflag [#allocation3], %s112
        %s114 = sand.u32 %s26, 1
        %s115 = smul.addr %s114, 6
        %s116 = scalar_lea.vmem [#allocation2], %s115
        // Predicated region
        $region25: #{tpu_custom_call.1} parent=23 // pred_check
          %p117 = pneg %p39
        $region26: #{tpu_custom_call.1} parent=23 // pred_check_branch
          %119 = sbr.rel (%p117) target = $region28
        $region27: #{tpu_custom_call.1} parent=23 // pred_region
          %120 = dma.done %s113, 96
        $region28: #{tpu_custom_call.1} parent=23 // pred_fallthru
          _
        %s121 = sand.u32 %s26, 1
        %s122 = scalar_lea.sflag [#allocation3], %s121
        %s123 = sand.u32 %s26, 1
        %s124 = smul.addr %s123, 6
        %s125 = scalar_lea.vmem [#allocation2], %s124
        %p126 = pneg %p39
        %p127 = pneg %p36
        %p128 = pneg %p65
        %p129 = pneg %p62
        %s130 = sand.u32 %s52, 1
        %s131 = scalar_lea.sflag [#allocation4], %s130
        %s132 = sand.u32 %s52, 1
        %s133 = smul.addr %s132, 2
        %s134 = scalar_lea.vmem [#allocation5], %s133
        %v135 = vld [vmem:[%s116] sm:$0x3]
        %v136 = vld [vmem:[%s116 + $0x2] sm:$0x3]
        %v137 = vld [vmem:[%s116 + $0x4] sm:$0x3]
        %v141 = vlaneseq
        %v142 = vshrl.u32 %v141, 7
        %v143 = vsub.s32 0, %v142
        %v144 = vrot.slane %v135, %v143
        %v145 = vlaneseq
        %v146 = vshrl.u32 %v145, 7
        %v147 = vsub.s32 1, %v146
        %v148 = vrot.slane %v135, %v147
        %v149 = vlaneseq
        %v150 = vshrl.u32 %v149, 7
        %v151 = vsub.s32 0, %v150
        %v152 = vrot.slane %v136, %v151
        %v153 = vlaneseq
        %v154 = vshrl.u32 %v153, 7
        %v155 = vsub.s32 1, %v154
        %v156 = vrot.slane %v136, %v155
        %v157 = vlaneseq
        %v158 = vshrl.u32 %v157, 7
        %v159 = vsub.s32 0, %v158
        %v160 = vrot.slane %v137, %v159
        %v161 = vlaneseq
        %v162 = vshrl.u32 %v161, 7
        %v163 = vsub.s32 1, %v162
        %v164 = vrot.slane %v137, %v163
        %vm171 = vcmask 1040384
        %v172 = vsel %vm171, %v144, 0.0
        %v173 = vsel %vm171, %v148, 0.0
        %v174 = vadd.f32 %v172, %v173
        %175 = vadd.xlane.f32.xlu0 %v174
        %v176 = vpop.xlane.xlu0 %175
        %v177 = vsel %vm171, %v152, 0.0
        %v178 = vsel %vm171, %v156, 0.0
        %v179 = vadd.f32 %v177, %v178
        %180 = vadd.xlane.f32.xlu0 %v179
        %v181 = vpop.xlane.xlu0 %180
        %v182 = vsel %vm171, %v160, 0.0
        %v183 = vsel %vm171, %v164, 0.0
        %v184 = vadd.f32 %v182, %v183
        %185 = vadd.xlane.f32.xlu0 %v184
        %v186 = vpop.xlane.xlu0 %185
        %v187 = vadd.f32 %v176, 0.0
        %v188 = vadd.f32 %v181, 0.0
        %v189 = vadd.f32 %v186, 0.0
        %v190 = vmul.f32 %v187, 0.00390625
        %v191 = vmul.f32 %v188, 0.00390625
        %v192 = vmul.f32 %v189, 0.00390625
        %v196 = vlaneseq
        %v197 = vshrl.u32 %v196, 7
        %v198 = vsub.s32 0, %v197
        %v199 = vrot.slane %v190, %v198
        %v200 = vlaneseq
        %v201 = vshrl.u32 %v200, 7
        %v202 = vsub.s32 0, %v201
        %v203 = vrot.slane %v191, %v202
        %v204 = vlaneseq
        %v205 = vshrl.u32 %v204, 7
        %v206 = vsub.s32 0, %v205
        %v207 = vrot.slane %v192, %v206
        %v211 = vsub.f32 %v135, %v199
        %v212 = vsub.f32 %v136, %v203
        %v213 = vsub.f32 %v137, %v207
        %v214 = vmul.f32 %v211, %v211
        %v215 = vmul.f32 %v212, %v212
        %v216 = vadd.f32 %v214, %v215
        %v217 = vmul.f32 %v213, %v213
        %v218 = vadd.f32 %v216, %v217
        %v219 = vrsqrt.pop %v218
        %v220 = vmul.f32 %v218, %v219
        %vm221 = vcmp.eq.f32.partialorder %v218, inf
        %v222 = vsel %vm221, %v218, %v220
        %vm223 = vcmp.eq.f32.partialorder %v218, 0.0
        %v224 = vand.u32 %v218, 2147483648
        %v225 = vsel %vm223, %v224, %v222
        %v226 = vadd.f32 %v225, 0.0
        %v227 = vlaneseq
        %vm228 = vcmp.ge.s32.totalorder %v227, 0
        %vm229 = vcmp.lt.s32.totalorder %v227, 256
        %vm230 = vmand %vm228, %vm229
        %231 = vst.msk [vmem:[%s134] sm:$0x3] %vm230, %v226
        %s232 = sand.u32 %s52, 1
        %s233 = scalar_lea.sflag [#allocation4], %s232
        %s234 = sand.u32 %s52, 1
        %s235 = smul.addr %s234, 2
        %s236 = scalar_lea.vmem [#allocation5], %s235
        // Predicated region
        $region29: #{tpu_custom_call.1} parent=23 // pred_check
          %p237 = pneg %p62
        $region30: #{tpu_custom_call.1} parent=23 // pred_check_branch
          %239 = sbr.rel (%p237) target = $region32
        $region31: #{tpu_custom_call.1} parent=23 // pred_region
          %s241 = ssub.s32 32, 32
          %242 = vsyncadd %s233, %s241
          %s243 = smul.addr %s18, 2
          %s244 = smul.addr %s243, 16
          %s245 = scalar_lea.hbm %s1, %s244
          %s247 = sshll.u32 %s236, 4
          %s248 = int_to_ptr.vmem [resolvable:$true] %s247
          %250 = dma.vmem_to_hbm [thread:$0]  %s248, 32, %s245, %s233
        $region32: #{tpu_custom_call.1} parent=23 // pred_fallthru
          _
      $region24: #{tpu_custom_call.1} parent=5 // pred_fallthru
        _
      %p251 = scmp.le.s32.totalorder 2, %s13
      // Predicated region
      $region33: #{tpu_custom_call.1} parent=5 // pred_check
        %p252 = pneg %p251
      $region34: #{tpu_custom_call.1} parent=5 // pred_check_branch
        %254 = sbr.rel (%p252) target = $region36
      $region35: #{tpu_custom_call.1} parent=5 // pred_region
        %s255 = ssub.s32 %s13, 2
        // Predicated region
        $region37: #{tpu_custom_call.1} parent=35 // pred_check
          %p256 = pneg %p68
        $region38: #{tpu_custom_call.1} parent=35 // pred_check_branch
          %258 = sbr.rel (%p256) target = $region40
        $region39: #{tpu_custom_call.1} parent=35 // pred_region
          %s259 = sand.u32 %s53, 1
          %s260 = scalar_lea.sflag [#allocation4], %s259
          %s261 = sand.u32 %s53, 1
          %s262 = smul.addr %s261, 2
          %s263 = scalar_lea.vmem [#allocation5], %s262
          %264 = dma.done %s260, 32
        $region40: #{tpu_custom_call.1} parent=35 // pred_fallthru
          _
      $region36: #{tpu_custom_call.1} parent=5 // pred_fallthru
        _
    $region6: #{tpu_custom_call.1} parent=1 // loop_footer
      %s17 = sadd.s32 1, %s13
    $region7: #{tpu_custom_call.1} parent=1 // loop_footer_branch
      %12 = sbr.rel target = $region3
    $region8: #{tpu_custom_call.1} parent=1 // loop_exit
      _
    %265 = vsyncpa [#allocation3], 1
    %s266 = scalar_lea.sflag [#allocation3], 1
    %267 = vsyncpa %s266, 1
    %268 = vsyncpa [#allocation4], 1
    %s269 = scalar_lea.sflag [#allocation4], 1
    %270 = vsyncpa %s269, 1

</llo_original>
